<compile_context>
chip_gen: v7x
topology: tpu7x:2x2x1
jax: 0.10.0
libtpu: 0.0.40
codegen_flags: <defaults>
</compile_context>

<pallas_src>
import functools

import jax
import jax.numpy as jnp
from jax.experimental import pallas as pl
from jax.experimental.pallas import tpu as pltpu

HIDDEN = 128
IN_FEATURES = 6


def _round_up(x, m):
    return (x + m - 1) // m * m


def qnet_kernel(x_ref, w1_ref, b1_ref, w2_ref, b2_ref, w3_ref, b3_ref,
                w4_ref, b4_ref, o_ref):
    # Layers 1-3: bf16 MXU matmuls with f32 accumulation; bias + ReLU
    # epilogue in bf16 (packed vregs, bf16 VALU on v6e/v7x).
    x = x_ref[...]                                               # bf16 [tile, 6]
    h = jnp.dot(x, w1_ref[...], preferred_element_type=jnp.float32)
    h = jnp.maximum(h.astype(jnp.bfloat16) + b1_ref[...], 0.0)   # relu(l1)
    h = jnp.dot(h, w2_ref[...], preferred_element_type=jnp.float32)
    h = jnp.maximum(h.astype(jnp.bfloat16) + b2_ref[...], 0.0)   # relu(l2)
    h = jnp.dot(h, w3_ref[...], preferred_element_type=jnp.float32)
    h = jnp.maximum(h.astype(jnp.bfloat16) + b3_ref[...], 0.0)   # relu(l3)
    # Final layer: f32 bias add, f32 output at its true (unpadded) width.
    o_ref[...] = (jnp.dot(h, w4_ref[...], preferred_element_type=jnp.float32)
                  + b4_ref[...])


def prepare_params(params):
    """One-time, outside-jit prep of kernel-ready parameter dtypes.

    Call once after init / after each optimizer step (NOT on every forward),
    so the per-call jit graph contains no weight cast / pad ops.
    """
    return {
        "w1": params["w1"].astype(jnp.bfloat16),
        "b1": params["b1"].astype(jnp.bfloat16),
        "w2": params["w2"].astype(jnp.bfloat16),
        "b2": params["b2"].astype(jnp.bfloat16),
        "w3": params["w3"].astype(jnp.bfloat16),
        "b3": params["b3"].astype(jnp.bfloat16),
        "w4": params["w4"].astype(jnp.bfloat16),
        "b4": params["b4"].astype(jnp.float32),
    }


@functools.partial(jax.jit, static_argnames=("batch_tile",))
def qnet_forward(x, prepared, *, batch_tile=2048):
    """x: [B, 6] (any float dtype). prepared: output of prepare_params()."""
    B, F = x.shape
    assert F == IN_FEATURES
    action_size = prepared["w4"].shape[1]

    # x.float() in PyTorch; we feed the MXU directly in bf16 (halves input DMA).
    x = x.astype(jnp.bfloat16)

    # Tile selection:
    #  * as large as possible -> fewer ~0.35 us grid steps (v5e/v6e, 1 TC),
    #  * but for B > 512 keep >= 2 (even) grid steps so the "parallel" batch
    #    axis shards across the 2 TensorCores on v7x,
    #  * multiple of 8 so the (8, 128) BlockSpec constraint holds.
    tile = min(_round_up(batch_tile, 8), _round_up(B, 8))
    if B > 512:
        tile = min(tile, _round_up(pl.cdiv(B, 2), 8))
    grid = (pl.cdiv(B, tile),)

    def full_spec(shape):
        return pl.BlockSpec(shape, lambda i: (0, 0))

    w1, b1 = prepared["w1"], prepared["b1"]
    w2, b2 = prepared["w2"], prepared["b2"]
    w3, b3 = prepared["w3"], prepared["b3"]
    w4, b4 = prepared["w4"], prepared["b4"]

    return pl.pallas_call(
        qnet_kernel,
        out_shape=jax.ShapeDtypeStruct((B, action_size), jnp.float32),
        grid_spec=pltpu.PrefetchScalarGridSpec(
            num_scalar_prefetch=0,
            grid=grid,
            in_specs=[
                pl.BlockSpec((tile, IN_FEATURES), lambda i: (i, 0)),
                full_spec(w1.shape), full_spec(b1.shape),
                full_spec(w2.shape), full_spec(b2.shape),
                full_spec(w3.shape), full_spec(b3.shape),
                full_spec(w4.shape), full_spec(b4.shape),
            ],
            out_specs=pl.BlockSpec((tile, action_size), lambda i: (i, 0)),
        ),
        compiler_params=pltpu.CompilerParams(
            dimension_semantics=("parallel",)),
    )(x, w1, b1, w2, b2, w3, b3, w4, b4)


def init_params(key, action_size):
    """Deterministic init mimicking PyTorch Linear default (U[-1/sqrt(fan_in), +])."""
    dims = [(IN_FEATURES, HIDDEN), (HIDDEN, HIDDEN), (HIDDEN, HIDDEN),
            (HIDDEN, action_size)]
    params = {}
    for idx, (fan_in, fan_out) in enumerate(dims, start=1):
        key, kw, kb = jax.random.split(key, 3)
        bound = 1.0 / jnp.sqrt(jnp.float32(fan_in))
        params[f"w{idx}"] = jax.random.uniform(
            kw, (fan_in, fan_out), jnp.float32, -bound, bound)
        params[f"b{idx}"] = jax.random.uniform(
            kb, (1, fan_out), jnp.float32, -bound, bound)
    return params


def qnet_reference(x, params):
    h = x.astype(jnp.float32)
    h = jax.nn.relu(h @ params["w1"] + params["b1"])
    h = jax.nn.relu(h @ params["w2"] + params["b2"])
    h = jax.nn.relu(h @ params["w3"] + params["b3"])
    return h @ params["w4"] + params["b4"]


if __name__ == "__main__":
    key = jax.random.PRNGKey(0)
    key, kx, kp, kx2 = jax.random.split(key, 4)

    action_size = 4
    params = init_params(kp, action_size)
    prepared = prepare_params(params)   # one-time, outside jit

    # Small-batch case (B=8): whole batch in one grid step (RL act() path).
    batch = 8
    x = jax.random.normal(kx, (batch, IN_FEATURES), jnp.float32)
    out = jax.block_until_ready(qnet_forward(x, prepared))
    ref = qnet_reference(x, params)
    assert out.shape == (batch, action_size)
    # bf16 matmuls / bf16 epilogue with f32 accumulation vs pure-f32 reference.
    assert jnp.allclose(out, ref, atol=5e-2, rtol=5e-2), "mismatch vs reference (B=8)"

    # Larger batch: 2-step parallel grid (shards across both TCs on v7x)
    # with a partial tail tile.
    batch2 = 1000
    x2 = jax.random.normal(kx2, (batch2, IN_FEATURES), jnp.float32)
    out2 = jax.block_until_ready(qnet_forward(x2, prepared))
    ref2 = qnet_reference(x2, params)
    assert out2.shape == (batch2, action_size)
    assert jnp.allclose(out2, ref2, atol=5e-2, rtol=5e-2), "mismatch vs reference (B=1000)"

    print("KERNEL_OK")
</pallas_src>

<mosaic_0001>
module attributes {stable_mosaic.version = 11 : i64} {
  func.func @qnet_kernel(%arg0: i32, %arg1: memref<8x6xbf16, #tpu.memory_space<vmem>>, %arg2: memref<6x128xbf16, #tpu.memory_space<vmem>>, %arg3: memref<1x128xbf16, #tpu.memory_space<vmem>>, %arg4: memref<128x128xbf16, #tpu.memory_space<vmem>>, %arg5: memref<1x128xbf16, #tpu.memory_space<vmem>>, %arg6: memref<128x128xbf16, #tpu.memory_space<vmem>>, %arg7: memref<1x128xbf16, #tpu.memory_space<vmem>>, %arg8: memref<128x4xbf16, #tpu.memory_space<vmem>>, %arg9: memref<1x4xf32, #tpu.memory_space<vmem>>, %arg10: memref<8x4xf32, #tpu.memory_space<vmem>>) attributes {dimension_semantics = [#tpu.dimension_semantics<parallel>], iteration_bounds = array<i64: 1>, scalar_prefetch = 0 : i64, scratch_operands = 0 : i64, tpu.core_type = #tpu.core_type<tc>, window_params = [{transform_indices = @transform_0, window_bounds = array<i64: 8, 6>}, {pipeline_mode = #tpu.pipeline_mode<synchronous>, transform_indices = @transform_1, window_bounds = array<i64: 6, 128>}, {pipeline_mode = #tpu.pipeline_mode<synchronous>, transform_indices = @transform_2, window_bounds = array<i64: 1, 128>}, {pipeline_mode = #tpu.pipeline_mode<synchronous>, transform_indices = @transform_3, window_bounds = array<i64: 128, 128>}, {pipeline_mode = #tpu.pipeline_mode<synchronous>, transform_indices = @transform_4, window_bounds = array<i64: 1, 128>}, {pipeline_mode = #tpu.pipeline_mode<synchronous>, transform_indices = @transform_5, window_bounds = array<i64: 128, 128>}, {pipeline_mode = #tpu.pipeline_mode<synchronous>, transform_indices = @transform_6, window_bounds = array<i64: 1, 128>}, {pipeline_mode = #tpu.pipeline_mode<synchronous>, transform_indices = @transform_7, window_bounds = array<i64: 128, 4>}, {pipeline_mode = #tpu.pipeline_mode<synchronous>, transform_indices = @transform_8, window_bounds = array<i64: 1, 4>}, {transform_indices = @transform_9, window_bounds = array<i64: 8, 4>}]} {
    %c0 = arith.constant 0 : index
    %c0_0 = arith.constant 0 : index
    %0 = vector.load %arg1[%c0, %c0_0] : memref<8x6xbf16, #tpu.memory_space<vmem>>, vector<8x6xbf16>
    %c0_1 = arith.constant 0 : index
    %c0_2 = arith.constant 0 : index
    %1 = vector.load %arg2[%c0_1, %c0_2] : memref<6x128xbf16, #tpu.memory_space<vmem>>, vector<6x128xbf16>
    %cst = arith.constant dense<0.000000e+00> : vector<8x128xf32>
    %2 = tpu.matmul %0, %1, %cst {dimension_numbers = #tpu.dot_dimension_numbers<[1], [0], [0], [1], [0, 0, 1, 1], [], []>} : vector<8x6xbf16>, vector<6x128xbf16>, vector<8x128xf32> -> vector<8x128xf32>
    %3 = arith.truncf %2 : vector<8x128xf32> to vector<8x128xbf16>
    %c0_3 = arith.constant 0 : index
    %c0_4 = arith.constant 0 : index
    %4 = vector.load %arg3[%c0_3, %c0_4] : memref<1x128xbf16, #tpu.memory_space<vmem>>, vector<1x128xbf16>
    %5 = vector.broadcast %4 : vector<1x128xbf16> to vector<8x128xbf16>
    %6 = arith.addf %3, %5 : vector<8x128xbf16>
    %cst_5 = arith.constant 0.000000e+00 : bf16
    %7 = vector.broadcast %cst_5 : bf16 to vector<8x128xbf16>
    %8 = arith.maximumf %6, %7 : vector<8x128xbf16>
    %c0_6 = arith.constant 0 : index
    %c0_7 = arith.constant 0 : index
    %9 = vector.load %arg4[%c0_6, %c0_7] : memref<128x128xbf16, #tpu.memory_space<vmem>>, vector<128x128xbf16>
    %cst_8 = arith.constant dense<0.000000e+00> : vector<8x128xf32>
    %10 = tpu.matmul %8, %9, %cst_8 {dimension_numbers = #tpu.dot_dimension_numbers<[1], [0], [0], [1], [0, 0, 1, 1], [], []>} : vector<8x128xbf16>, vector<128x128xbf16>, vector<8x128xf32> -> vector<8x128xf32>
    %11 = arith.truncf %10 : vector<8x128xf32> to vector<8x128xbf16>
    %c0_9 = arith.constant 0 : index
    %c0_10 = arith.constant 0 : index
    %12 = vector.load %arg5[%c0_9, %c0_10] : memref<1x128xbf16, #tpu.memory_space<vmem>>, vector<1x128xbf16>
    %13 = vector.broadcast %12 : vector<1x128xbf16> to vector<8x128xbf16>
    %14 = arith.addf %11, %13 : vector<8x128xbf16>
    %cst_11 = arith.constant 0.000000e+00 : bf16
    %15 = vector.broadcast %cst_11 : bf16 to vector<8x128xbf16>
    %16 = arith.maximumf %14, %15 : vector<8x128xbf16>
    %c0_12 = arith.constant 0 : index
    %c0_13 = arith.constant 0 : index
    %17 = vector.load %arg6[%c0_12, %c0_13] : memref<128x128xbf16, #tpu.memory_space<vmem>>, vector<128x128xbf16>
    %cst_14 = arith.constant dense<0.000000e+00> : vector<8x128xf32>
    %18 = tpu.matmul %16, %17, %cst_14 {dimension_numbers = #tpu.dot_dimension_numbers<[1], [0], [0], [1], [0, 0, 1, 1], [], []>} : vector<8x128xbf16>, vector<128x128xbf16>, vector<8x128xf32> -> vector<8x128xf32>
    %19 = arith.truncf %18 : vector<8x128xf32> to vector<8x128xbf16>
    %c0_15 = arith.constant 0 : index
    %c0_16 = arith.constant 0 : index
    %20 = vector.load %arg7[%c0_15, %c0_16] : memref<1x128xbf16, #tpu.memory_space<vmem>>, vector<1x128xbf16>
    %21 = vector.broadcast %20 : vector<1x128xbf16> to vector<8x128xbf16>
    %22 = arith.addf %19, %21 : vector<8x128xbf16>
    %cst_17 = arith.constant 0.000000e+00 : bf16
    %23 = vector.broadcast %cst_17 : bf16 to vector<8x128xbf16>
    %24 = arith.maximumf %22, %23 : vector<8x128xbf16>
    %c0_18 = arith.constant 0 : index
    %c0_19 = arith.constant 0 : index
    %25 = vector.load %arg8[%c0_18, %c0_19] : memref<128x4xbf16, #tpu.memory_space<vmem>>, vector<128x4xbf16>
    %cst_20 = arith.constant dense<0.000000e+00> : vector<8x4xf32>
    %26 = tpu.matmul %24, %25, %cst_20 {dimension_numbers = #tpu.dot_dimension_numbers<[1], [0], [0], [1], [0, 0, 1, 1], [], []>} : vector<8x128xbf16>, vector<128x4xbf16>, vector<8x4xf32> -> vector<8x4xf32>
    %c0_21 = arith.constant 0 : index
    %c0_22 = arith.constant 0 : index
    %27 = vector.load %arg9[%c0_21, %c0_22] : memref<1x4xf32, #tpu.memory_space<vmem>>, vector<1x4xf32>
    %28 = vector.broadcast %27 : vector<1x4xf32> to vector<8x4xf32>
    %29 = arith.addf %26, %28 : vector<8x4xf32>
    %c0_23 = arith.constant 0 : index
    %c0_24 = arith.constant 0 : index
    %30 = vector.load %arg10[%c0_23, %c0_24] : memref<8x4xf32, #tpu.memory_space<vmem>>, vector<8x4xf32>
    tpu.vector_store %arg10[%c0_23, %c0_24], %29 {strides = array<i32>} : memref<8x4xf32, #tpu.memory_space<vmem>>, vector<8x4xf32>,
    return
  }
  func.func @transform_0(%arg0: i32) -> (i32, i32) {
    %c0_i32 = arith.constant 0 : i32
    %c0_i32_0 = arith.constant 0 : i32
    return %arg0, %c0_i32 : i32, i32
  }
  func.func @transform_1(%arg0: i32) -> (i32, i32) {
    %c0_i32 = arith.constant 0 : i32
    %c0_i32_0 = arith.constant 0 : i32
    %c0_i32_1 = arith.constant 0 : i32
    return %c0_i32, %c0_i32_0 : i32, i32
  }
  func.func @transform_2(%arg0: i32) -> (i32, i32) {
    %c0_i32 = arith.constant 0 : i32
    %c0_i32_0 = arith.constant 0 : i32
    %c0_i32_1 = arith.constant 0 : i32
    return %c0_i32, %c0_i32_0 : i32, i32
  }
  func.func @transform_3(%arg0: i32) -> (i32, i32) {
    %c0_i32 = arith.constant 0 : i32
    %c0_i32_0 = arith.constant 0 : i32
    %c0_i32_1 = arith.constant 0 : i32
    return %c0_i32, %c0_i32_0 : i32, i32
  }
  func.func @transform_4(%arg0: i32) -> (i32, i32) {
    %c0_i32 = arith.constant 0 : i32
    %c0_i32_0 = arith.constant 0 : i32
    %c0_i32_1 = arith.constant 0 : i32
    return %c0_i32, %c0_i32_0 : i32, i32
  }
  func.func @transform_5(%arg0: i32) -> (i32, i32) {
    %c0_i32 = arith.constant 0 : i32
    %c0_i32_0 = arith.constant 0 : i32
    %c0_i32_1 = arith.constant 0 : i32
    return %c0_i32, %c0_i32_0 : i32, i32
  }
  func.func @transform_6(%arg0: i32) -> (i32, i32) {
    %c0_i32 = arith.constant 0 : i32
    %c0_i32_0 = arith.constant 0 : i32
    %c0_i32_1 = arith.constant 0 : i32
    return %c0_i32, %c0_i32_0 : i32, i32
  }
  func.func @transform_7(%arg0: i32) -> (i32, i32) {
    %c0_i32 = arith.constant 0 : i32
    %c0_i32_0 = arith.constant 0 : i32
    %c0_i32_1 = arith.constant 0 : i32
    return %c0_i32, %c0_i32_0 : i32, i32
  }
  func.func @transform_8(%arg0: i32) -> (i32, i32) {
    %c0_i32 = arith.constant 0 : i32
    %c0_i32_0 = arith.constant 0 : i32
    %c0_i32_1 = arith.constant 0 : i32
    return %c0_i32, %c0_i32_0 : i32, i32
  }
  func.func @transform_9(%arg0: i32) -> (i32, i32) {
    %c0_i32 = arith.constant 0 : i32
    %c0_i32_0 = arith.constant 0 : i32
    return %arg0, %c0_i32 : i32, i32
  }
}

</mosaic_0001>

<llo_original>
// kernel: qnet_forward.1
$region0: #{qnet_forward.1}
  #allocation0 [shape = 'u32[]', space=smem, size = 0x4, offset = 0x4, fixed_abs, tag = 'smem constant byte address 0x4 - core index']
  #allocation1 [shape = 'u32[144,128]{1,0:T(1,128)}', space=vmem, size = 0x12000, scoped, tag = 'internal scratch']
  %s0 = inlined_call_operand.vmem [shape: bf16[8,6], index: 0, kind: input, shape index: {}]
  %s1 = inlined_call_operand.vmem [shape: bf16[6,128], index: 1, kind: input, shape index: {}]
  %s2 = inlined_call_operand.vmem [shape: bf16[1,128], index: 2, kind: input, shape index: {}]
  %s3 = inlined_call_operand.vmem [shape: bf16[128,128], index: 3, kind: input, shape index: {}]
  %s4 = inlined_call_operand.vmem [shape: bf16[1,128], index: 4, kind: input, shape index: {}]
  %s5 = inlined_call_operand.hbm [shape: bf16[128,128], index: 5, kind: input, shape index: {}]
  %s6 = inlined_call_operand.vmem [shape: bf16[1,128], index: 6, kind: input, shape index: {}]
  %s7 = inlined_call_operand.vmem [shape: bf16[128,4], index: 7, kind: input, shape index: {}]
  %s8 = inlined_call_operand.vmem [shape: f32[1,4], index: 8, kind: input, shape index: {}]
  %s9 = inlined_call_operand.vmem [shape: f32[8,4], index: 9, kind: output, shape index: {}]
  %s10 = sld [smem:[#allocation0]]
  $region50: #{qnet_forward.1} parent=0
    _
  %s12 = ssub.s32 1, %s10
  %s13 = scalar_select 0, %s12, %s10
  $region1: #{qnet_forward.1} parent=0
    #allocation2 [shape = 'u8[32768]{0}', space=vmem, size = 0x8000, scoped, tag = 'input window, operand 5, single buffered']
    #allocation3 [shape = 's32[1]{0}', space=sflag, size = 0x4, scoped, tag = 'scoped memory for qnet_forward.1']
    %14 = vsyncpa [#allocation3], 0
    // Predicated region
    $region2: #{qnet_forward.1} parent=1 // pred_check
      _
    $region3: #{qnet_forward.1} parent=1 // pred_check_branch
      %16 = sbr.rel (0) target = $region5
    $region4: #{qnet_forward.1} parent=1 // pred_region
      _
    $region5: #{qnet_forward.1} parent=1 // pred_fallthru
      _
    // Predicated region
    $region6: #{qnet_forward.1} parent=1 // pred_check
      _
    $region7: #{qnet_forward.1} parent=1 // pred_check_branch
      %18 = sbr.rel (0) target = $region9
    $region8: #{qnet_forward.1} parent=1 // pred_region
      _
    $region9: #{qnet_forward.1} parent=1 // pred_fallthru
      _
    // Predicated region
    $region10: #{qnet_forward.1} parent=1 // pred_check
      _
    $region11: #{qnet_forward.1} parent=1 // pred_check_branch
      %20 = sbr.rel (0) target = $region13
    $region12: #{qnet_forward.1} parent=1 // pred_region
      _
    $region13: #{qnet_forward.1} parent=1 // pred_fallthru
      _
    // Predicated region
    $region14: #{qnet_forward.1} parent=1 // pred_check
      _
    $region15: #{qnet_forward.1} parent=1 // pred_check_branch
      %22 = sbr.rel (0) target = $region17
    $region16: #{qnet_forward.1} parent=1 // pred_region
      _
    $region17: #{qnet_forward.1} parent=1 // pred_fallthru
      _
    // Predicated region
    $region18: #{qnet_forward.1} parent=1 // pred_check
      _
    $region19: #{qnet_forward.1} parent=1 // pred_check_branch
      %24 = sbr.rel (0) target = $region21
    $region20: #{qnet_forward.1} parent=1 // pred_region
      _
    $region21: #{qnet_forward.1} parent=1 // pred_fallthru
      _
    // Predicated region
    $region22: #{qnet_forward.1} parent=1 // pred_check
      _
    $region23: #{qnet_forward.1} parent=1 // pred_check_branch
      %26 = sbr.rel (0) target = $region25
    $region24: #{qnet_forward.1} parent=1 // pred_region
      %s28 = ssub.s32 1024, 1024
      %29 = vsyncadd [#allocation3], %s28
      %s30 = sshll.u32 [#allocation2], 4
      %s31 = int_to_ptr.vmem [resolvable:$true] %s30
      %36 = dma.hbm_to_vmem [thread:$0]  %s5, 1024, %s31, [#allocation3], 64, 64, 4
    $region25: #{qnet_forward.1} parent=1 // pred_fallthru
      _
    // Predicated region
    $region26: #{qnet_forward.1} parent=1 // pred_check
      _
    $region27: #{qnet_forward.1} parent=1 // pred_check_branch
      %38 = sbr.rel (0) target = $region29
    $region28: #{qnet_forward.1} parent=1 // pred_region
      _
    $region29: #{qnet_forward.1} parent=1 // pred_fallthru
      _
    // Predicated region
    $region30: #{qnet_forward.1} parent=1 // pred_check
      _
    $region31: #{qnet_forward.1} parent=1 // pred_check_branch
      %40 = sbr.rel (0) target = $region33
    $region32: #{qnet_forward.1} parent=1 // pred_region
      _
    $region33: #{qnet_forward.1} parent=1 // pred_fallthru
      _
    // Predicated region
    $region34: #{qnet_forward.1} parent=1 // pred_check
      _
    $region35: #{qnet_forward.1} parent=1 // pred_check_branch
      %42 = sbr.rel (0) target = $region37
    $region36: #{qnet_forward.1} parent=1 // pred_region
      _
    $region37: #{qnet_forward.1} parent=1 // pred_fallthru
      _
    // Predicated region
    $region38: #{qnet_forward.1} parent=1 // pred_check
      _
    $region39: #{qnet_forward.1} parent=1 // pred_check_branch
      %44 = sbr.rel (0) target = $region41
    $region40: #{qnet_forward.1} parent=1 // pred_region
      %45 = dma.done [#allocation3], 1024
    $region41: #{qnet_forward.1} parent=1 // pred_fallthru
      _
    %v47 = vld [vmem:[%s0] sm:$0xf]
    %v48 = vld [vmem:[%s1] sm:$0x7]
    %vm49 = vcmask 48128
    %v51 = vsel %vm49, %v47, 0
    %vm53 = vcmask 1042432
    %v55 = vsel %vm53, %v48, 0
    %57 = vmatprep.subr.bf16.mxu0 0
    %58 = vmatpush1.bf16.msra.mxu0 %v55
    %59 = vmatprep.subr.bf16.mxu0 0
    %60 = vmatpush1.bf16.msra.mxu0 0
    %61 = vmatprep.subr.bf16.mxu0 0
    %62 = vmatpush1.bf16.msra.mxu0 0
    %63 = vmatprep.subr.bf16.mxu0 0
    %64 = vmatpush1.bf16.msra.mxu0 0
    %65 = vmatprep.subr.bf16.mxu0 0
    %66 = vmatpush1.bf16.msra.mxu0 0
    %67 = vmatprep.subr.bf16.mxu0 0
    %68 = vmatpush1.bf16.msra.mxu0 0
    %69 = vmatprep.subr.bf16.mxu0 0
    %70 = vmatpush1.bf16.msra.mxu0 0
    %71 = vmatprep.subr.bf16.mxu0 0
    %72 = vmatpush1.bf16.msra.mxu0 0
    %73 = vmatprep.subr.bf16.mxu0 0
    %74 = vmatpush1.bf16.msra.mxu0 0
    %75 = vmatprep.subr.bf16.mxu0 0
    %76 = vmatpush1.bf16.msra.mxu0 0
    %77 = vmatprep.subr.bf16.mxu0 0
    %78 = vmatpush1.bf16.msra.mxu0 0
    %79 = vmatprep.subr.bf16.mxu0 0
    %80 = vmatpush1.bf16.msra.mxu0 0
    %81 = vmatprep.subr.bf16.mxu0 0
    %82 = vmatpush1.bf16.msra.mxu0 0
    %83 = vmatprep.subr.bf16.mxu0 0
    %84 = vmatpush1.bf16.msra.mxu0 0
    %85 = vmatprep.subr.bf16.mxu0 0
    %86 = vmatpush1.bf16.msra.mxu0 0
    %87 = vmatprep.subr.bf16.mxu0 0
    %88 = vmatpush1.bf16.msra.mxu0 0
    %89 = vmatprep.mubr.bf16.mxu0 0
    %90 = vmatmul.mubr.bf16.gmra.mrb[0].mxu0 %v51
    %v91 = vpop.f32.mrb[0].mxu0
    %v92 = vadd.f32 0.0, %v91
    %v93 = vpop.f32.mrb[0].mxu0
    %v94 = vpop.f32.mrb[0].mxu0
    %v95 = vpop.f32.mrb[0].mxu0
    %96 = vdwg.mxu0
    %v97 = vpack.c.bf16 %v92, %v92
    %v98 = vld [vmem:[%s2] sm:$0x1]
    %v100 = vpack.i.b16 %v98, %v98
    %v102 = vlaneseq
    %v103 = vshrl.u32 %v102, 7
    %v104 = vsub.s32 0, %v103
    %v105 = vrot.slane %v100, %v104
    %v106 = vadd.bf16 %v97, %v105
    %v107 = vmax.bf16 %v106, 0
    %v108 = vld [vmem:[%s3] sm:$0xf]
    %v109 = vld [vmem:[%s3 + $0x4] sm:$0xf]
    %v110 = vld [vmem:[%s3 + $0x8] sm:$0xf]
    %v111 = vld [vmem:[%s3 + $0xc] sm:$0xf]
    %v112 = vld [vmem:[%s3 + $0x10] sm:$0xf]
    %v113 = vld [vmem:[%s3 + $0x14] sm:$0xf]
    %v114 = vld [vmem:[%s3 + $0x18] sm:$0xf]
    %v115 = vld [vmem:[%s3 + $0x1c] sm:$0xf]
    %v116 = vld [vmem:[%s3 + $0x20] sm:$0xf]
    %v117 = vld [vmem:[%s3 + $0x24] sm:$0xf]
    %v118 = vld [vmem:[%s3 + $0x28] sm:$0xf]
    %v119 = vld [vmem:[%s3 + $0x2c] sm:$0xf]
    %v120 = vld [vmem:[%s3 + $0x30] sm:$0xf]
    %v121 = vld [vmem:[%s3 + $0x34] sm:$0xf]
    %v122 = vld [vmem:[%s3 + $0x38] sm:$0xf]
    %v123 = vld [vmem:[%s3 + $0x3c] sm:$0xf]
    %v140 = vunpack.c.l.b16 %v108
    %v141 = vunpack.c.l.b16 %v109
    %v142 = vunpack.c.l.b16 %v110
    %v143 = vunpack.c.l.b16 %v111
    %v144 = vunpack.c.l.b16 %v112
    %v145 = vunpack.c.l.b16 %v113
    %v146 = vunpack.c.l.b16 %v114
    %v147 = vunpack.c.l.b16 %v115
    %v148 = vunpack.c.l.b16 %v116
    %v149 = vunpack.c.l.b16 %v117
    %v150 = vunpack.c.l.b16 %v118
    %v151 = vunpack.c.l.b16 %v119
    %v152 = vunpack.c.l.b16 %v120
    %v153 = vunpack.c.l.b16 %v121
    %v154 = vunpack.c.l.b16 %v122
    %v155 = vunpack.c.l.b16 %v123
    %v156 = vpack.c.b16 %v141, %v140
    %v157 = vpack.c.b16 %v143, %v142
    %v158 = vpack.c.b16 %v145, %v144
    %v159 = vpack.c.b16 %v147, %v146
    %v160 = vpack.c.b16 %v149, %v148
    %v161 = vpack.c.b16 %v151, %v150
    %v162 = vpack.c.b16 %v153, %v152
    %v163 = vpack.c.b16 %v155, %v154
    %172 = vmatprep.subr.bf16.mxu0 0
    %173 = vmatpush1.bf16.msra.mxu0 %v156
    %174 = vmatprep.subr.bf16.mxu0 0
    %175 = vmatpush1.bf16.msra.mxu0 %v157
    %176 = vmatprep.subr.bf16.mxu0 0
    %177 = vmatpush1.bf16.msra.mxu0 %v158
    %178 = vmatprep.subr.bf16.mxu0 0
    %179 = vmatpush1.bf16.msra.mxu0 %v159
    %180 = vmatprep.subr.bf16.mxu0 0
    %181 = vmatpush1.bf16.msra.mxu0 %v160
    %182 = vmatprep.subr.bf16.mxu0 0
    %183 = vmatpush1.bf16.msra.mxu0 %v161
    %184 = vmatprep.subr.bf16.mxu0 0
    %185 = vmatpush1.bf16.msra.mxu0 %v162
    %186 = vmatprep.subr.bf16.mxu0 0
    %187 = vmatpush1.bf16.msra.mxu0 %v163
    %188 = vmatprep.subr.bf16.mxu0 0
    %189 = vmatpush1.bf16.msra.mxu0 0
    %190 = vmatprep.subr.bf16.mxu0 0
    %191 = vmatpush1.bf16.msra.mxu0 0
    %192 = vmatprep.subr.bf16.mxu0 0
    %193 = vmatpush1.bf16.msra.mxu0 0
    %194 = vmatprep.subr.bf16.mxu0 0
    %195 = vmatpush1.bf16.msra.mxu0 0
    %196 = vmatprep.subr.bf16.mxu0 0
    %197 = vmatpush1.bf16.msra.mxu0 0
    %198 = vmatprep.subr.bf16.mxu0 0
    %199 = vmatpush1.bf16.msra.mxu0 0
    %200 = vmatprep.subr.bf16.mxu0 0
    %201 = vmatpush1.bf16.msra.mxu0 0
    %202 = vmatprep.subr.bf16.mxu0 0
    %203 = vmatpush1.bf16.msra.mxu0 0
    %204 = vmatprep.mubr.bf16.mxu0 0
    %205 = vmatmul.mubr.bf16.gmra.mrb[0].mxu0 %v107
    %v206 = vpop.f32.mrb[0].mxu0
    %v207 = vadd.f32 0.0, %v206
    %v208 = vpop.f32.mrb[0].mxu0
    %v209 = vpop.f32.mrb[0].mxu0
    %v210 = vpop.f32.mrb[0].mxu0
    %211 = vdwg.mxu0
    %v212 = vpack.c.bf16 %v207, %v207
    %v213 = vld [vmem:[%s4] sm:$0x1]
    %v215 = vpack.i.b16 %v213, %v213
    %v217 = vlaneseq
    %v218 = vshrl.u32 %v217, 7
    %v219 = vsub.s32 0, %v218
    %v220 = vrot.slane %v215, %v219
    %v221 = vadd.bf16 %v212, %v220
    %v222 = vmax.bf16 %v221, 0
    %v223 = vld [vmem:[#allocation2] sm:$0xf]
    %v224 = vld [vmem:[#allocation2 + $0x4] sm:$0xf]
    %v225 = vld [vmem:[#allocation2 + $0x8] sm:$0xf]
    %v226 = vld [vmem:[#allocation2 + $0xc] sm:$0xf]
    %v227 = vld [vmem:[#allocation2 + $0x10] sm:$0xf]
    %v228 = vld [vmem:[#allocation2 + $0x14] sm:$0xf]
    %v229 = vld [vmem:[#allocation2 + $0x18] sm:$0xf]
    %v230 = vld [vmem:[#allocation2 + $0x1c] sm:$0xf]
    %v231 = vld [vmem:[#allocation2 + $0x20] sm:$0xf]
    %v232 = vld [vmem:[#allocation2 + $0x24] sm:$0xf]
    %v233 = vld [vmem:[#allocation2 + $0x28] sm:$0xf]
    %v234 = vld [vmem:[#allocation2 + $0x2c] sm:$0xf]
    %v235 = vld [vmem:[#allocation2 + $0x30] sm:$0xf]
    %v236 = vld [vmem:[#allocation2 + $0x34] sm:$0xf]
    %v237 = vld [vmem:[#allocation2 + $0x38] sm:$0xf]
    %v238 = vld [vmem:[#allocation2 + $0x3c] sm:$0xf]
    %v255 = vunpack.c.l.b16 %v223
    %v256 = vunpack.c.l.b16 %v224
    %v257 = vunpack.c.l.b16 %v225
    %v258 = vunpack.c.l.b16 %v226
    %v259 = vunpack.c.l.b16 %v227
    %v260 = vunpack.c.l.b16 %v228
    %v261 = vunpack.c.l.b16 %v229
    %v262 = vunpack.c.l.b16 %v230
    %v263 = vunpack.c.l.b16 %v231
    %v264 = vunpack.c.l.b16 %v232
    %v265 = vunpack.c.l.b16 %v233
    %v266 = vunpack.c.l.b16 %v234
    %v267 = vunpack.c.l.b16 %v235
    %v268 = vunpack.c.l.b16 %v236
    %v269 = vunpack.c.l.b16 %v237
    %v270 = vunpack.c.l.b16 %v238
    %v271 = vpack.c.b16 %v256, %v255
    %v272 = vpack.c.b16 %v258, %v257
    %v273 = vpack.c.b16 %v260, %v259
    %v274 = vpack.c.b16 %v262, %v261
    %v275 = vpack.c.b16 %v264, %v263
    %v276 = vpack.c.b16 %v266, %v265
    %v277 = vpack.c.b16 %v268, %v267
    %v278 = vpack.c.b16 %v270, %v269
    %287 = vmatprep.subr.bf16.mxu0 0
    %288 = vmatpush1.bf16.msra.mxu0 %v271
    %289 = vmatprep.subr.bf16.mxu0 0
    %290 = vmatpush1.bf16.msra.mxu0 %v272
    %291 = vmatprep.subr.bf16.mxu0 0
    %292 = vmatpush1.bf16.msra.mxu0 %v273
    %293 = vmatprep.subr.bf16.mxu0 0
    %294 = vmatpush1.bf16.msra.mxu0 %v274
    %295 = vmatprep.subr.bf16.mxu0 0
    %296 = vmatpush1.bf16.msra.mxu0 %v275
    %297 = vmatprep.subr.bf16.mxu0 0
    %298 = vmatpush1.bf16.msra.mxu0 %v276
    %299 = vmatprep.subr.bf16.mxu0 0
    %300 = vmatpush1.bf16.msra.mxu0 %v277
    %301 = vmatprep.subr.bf16.mxu0 0
    %302 = vmatpush1.bf16.msra.mxu0 %v278
    %303 = vmatprep.subr.bf16.mxu0 0
    %304 = vmatpush1.bf16.msra.mxu0 0
    %305 = vmatprep.subr.bf16.mxu0 0
    %306 = vmatpush1.bf16.msra.mxu0 0
    %307 = vmatprep.subr.bf16.mxu0 0
    %308 = vmatpush1.bf16.msra.mxu0 0
    %309 = vmatprep.subr.bf16.mxu0 0
    %310 = vmatpush1.bf16.msra.mxu0 0
    %311 = vmatprep.subr.bf16.mxu0 0
    %312 = vmatpush1.bf16.msra.mxu0 0
    %313 = vmatprep.subr.bf16.mxu0 0
    %314 = vmatpush1.bf16.msra.mxu0 0
    %315 = vmatprep.subr.bf16.mxu0 0
    %316 = vmatpush1.bf16.msra.mxu0 0
    %317 = vmatprep.subr.bf16.mxu0 0
    %318 = vmatpush1.bf16.msra.mxu0 0
    %319 = vmatprep.mubr.bf16.mxu0 0
    %320 = vmatmul.mubr.bf16.gmra.mrb[0].mxu0 %v222
    %v321 = vpop.f32.mrb[0].mxu0
    %v322 = vadd.f32 0.0, %v321
    %v323 = vpop.f32.mrb[0].mxu0
    %v324 = vpop.f32.mrb[0].mxu0
    %v325 = vpop.f32.mrb[0].mxu0
    %326 = vdwg.mxu0
    %v327 = vpack.c.bf16 %v322, %v322
    %v328 = vld [vmem:[%s6] sm:$0x1]
    %v330 = vpack.i.b16 %v328, %v328
    %v332 = vlaneseq
    %v333 = vshrl.u32 %v332, 7
    %v334 = vsub.s32 0, %v333
    %v335 = vrot.slane %v330, %v334
    %v336 = vadd.bf16 %v327, %v335
    %v337 = vmax.bf16 %v336, 0
    %v338 = vld [vmem:[%s7] sm:$0xf]
    %v339 = vld [vmem:[%s7 + $0x4] sm:$0xf]
    %v340 = vld [vmem:[%s7 + $0x8] sm:$0xf]
    %v341 = vld [vmem:[%s7 + $0xc] sm:$0xf]
    %v342 = vld [vmem:[%s7 + $0x10] sm:$0xf]
    %v343 = vld [vmem:[%s7 + $0x14] sm:$0xf]
    %v344 = vld [vmem:[%s7 + $0x18] sm:$0xf]
    %v345 = vld [vmem:[%s7 + $0x1c] sm:$0xf]
    %v346 = vld [vmem:[%s7 + $0x20] sm:$0xf]
    %v347 = vld [vmem:[%s7 + $0x24] sm:$0xf]
    %v348 = vld [vmem:[%s7 + $0x28] sm:$0xf]
    %v349 = vld [vmem:[%s7 + $0x2c] sm:$0xf]
    %v350 = vld [vmem:[%s7 + $0x30] sm:$0xf]
    %v351 = vld [vmem:[%s7 + $0x34] sm:$0xf]
    %v352 = vld [vmem:[%s7 + $0x38] sm:$0xf]
    %v353 = vld [vmem:[%s7 + $0x3c] sm:$0xf]
    %v354 = vld [vmem:[%s8] sm:$0x1]
    %v356 = vlaneseq
    %v357 = vshrl.u32 %v356, 7
    %v358 = vsub.s32 0, %v357
    %v359 = vrot.slane %v354, %v358
    %v377 = vunpack.c.l.b16 %v338
    %v378 = vunpack.c.l.b16 %v339
    %v379 = vunpack.c.l.b16 %v340
    %v380 = vunpack.c.l.b16 %v341
    %v381 = vunpack.c.l.b16 %v342
    %v382 = vunpack.c.l.b16 %v343
    %v383 = vunpack.c.l.b16 %v344
    %v384 = vunpack.c.l.b16 %v345
    %v385 = vunpack.c.l.b16 %v346
    %v386 = vunpack.c.l.b16 %v347
    %v387 = vunpack.c.l.b16 %v348
    %v388 = vunpack.c.l.b16 %v349
    %v389 = vunpack.c.l.b16 %v350
    %v390 = vunpack.c.l.b16 %v351
    %v391 = vunpack.c.l.b16 %v352
    %v392 = vunpack.c.l.b16 %v353
    %v393 = vpack.c.b16 %v378, %v377
    %v394 = vpack.c.b16 %v380, %v379
    %v395 = vpack.c.b16 %v382, %v381
    %v396 = vpack.c.b16 %v384, %v383
    %v397 = vpack.c.b16 %v386, %v385
    %v398 = vpack.c.b16 %v388, %v387
    %v399 = vpack.c.b16 %v390, %v389
    %v400 = vpack.c.b16 %v392, %v391
    %409 = vmatprep.subr.bf16.mxu0 0
    %410 = vmatpush1.bf16.msra.mxu0 %v393
    %411 = vmatprep.subr.bf16.mxu0 0
    %412 = vmatpush1.bf16.msra.mxu0 %v394
    %413 = vmatprep.subr.bf16.mxu0 0
    %414 = vmatpush1.bf16.msra.mxu0 %v395
    %415 = vmatprep.subr.bf16.mxu0 0
    %416 = vmatpush1.bf16.msra.mxu0 %v396
    %417 = vmatprep.subr.bf16.mxu0 0
    %418 = vmatpush1.bf16.msra.mxu0 %v397
    %419 = vmatprep.subr.bf16.mxu0 0
    %420 = vmatpush1.bf16.msra.mxu0 %v398
    %421 = vmatprep.subr.bf16.mxu0 0
    %422 = vmatpush1.bf16.msra.mxu0 %v399
    %423 = vmatprep.subr.bf16.mxu0 0
    %424 = vmatpush1.bf16.msra.mxu0 %v400
    %425 = vmatprep.subr.bf16.mxu0 0
    %426 = vmatpush1.bf16.msra.mxu0 0
    %427 = vmatprep.subr.bf16.mxu0 0
    %428 = vmatpush1.bf16.msra.mxu0 0
    %429 = vmatprep.subr.bf16.mxu0 0
    %430 = vmatpush1.bf16.msra.mxu0 0
    %431 = vmatprep.subr.bf16.mxu0 0
    %432 = vmatpush1.bf16.msra.mxu0 0
    %433 = vmatprep.subr.bf16.mxu0 0
    %434 = vmatpush1.bf16.msra.mxu0 0
    %435 = vmatprep.subr.bf16.mxu0 0
    %436 = vmatpush1.bf16.msra.mxu0 0
    %437 = vmatprep.subr.bf16.mxu0 0
    %438 = vmatpush1.bf16.msra.mxu0 0
    %439 = vmatprep.subr.bf16.mxu0 0
    %440 = vmatpush1.bf16.msra.mxu0 0
    %441 = vmatprep.mubr.bf16.mxu0 0
    %442 = vmatmul.mubr.bf16.gmra.mrb[0].mxu0 %v337
    %v443 = vpop.f32.mrb[0].mxu0
    %v444 = vadd.f32 %v359, %v443
    %v445 = vpop.f32.mrb[0].mxu0
    %v446 = vpop.f32.mrb[0].mxu0
    %v447 = vpop.f32.mrb[0].mxu0
    %448 = vdwg.mxu0
    %vm449 = vcmask 31744
    %450 = vst.msk [vmem:[%s9] sm:$0xff] %vm449, %v444
    // Predicated region
    $region42: #{qnet_forward.1} parent=1 // pred_check
      _
    $region43: #{qnet_forward.1} parent=1 // pred_check_branch
      %452 = sbr.rel (0) target = $region45
    $region44: #{qnet_forward.1} parent=1 // pred_region
      _
    $region45: #{qnet_forward.1} parent=1 // pred_fallthru
      _
    // Predicated region
    $region46: #{qnet_forward.1} parent=1 // pred_check
      _
    $region47: #{qnet_forward.1} parent=1 // pred_check_branch
      %454 = sbr.rel (0) target = $region49
    $region48: #{qnet_forward.1} parent=1 // pred_region
      _
    $region49: #{qnet_forward.1} parent=1 // pred_fallthru
      _
    %455 = vsyncpa [#allocation3], 1

</llo_original>
